<compile_context>
chip_gen: v5e
topology: v5e:2x2
jax: 0.10.0
libtpu: 0.0.40
codegen_flags: <defaults>
</compile_context>

<pallas_src>
import jax
import jax.numpy as jnp
from jax.experimental import pallas as pl
from jax.experimental.pallas import tpu as pltpu


def _reg_weighted_l1_kernel(feat_ref, ind_ref, mask_ref, tgt_ref, out_ref, acc_ref):
    # feat_ref: (1, C, tHW)        ind_ref: (1, K, 1) int32
    # mask_ref: (1, K, C) f32      tgt_ref: (1, K, C)
    # out_ref : (1, 1, 1) f32 per-batch partial sum
    # acc_ref : (K, C) f32 VMEM scratch holding the gathered pred rows
    h = pl.program_id(1)
    t_hw = feat_ref.shape[2]

    @pl.when(h == 0)
    def _():
        acc_ref[...] = jnp.zeros_like(acc_ref)

    feat = feat_ref[0]                       # (C, tHW), original dtype (f32 or bf16)
    idx = ind_ref[0]                         # (K, 1) int32; (K,1) broadcasts against the
    k = idx.shape[0]                         # (K,tHW) iota without an in-kernel transpose.

    # One-hot for this HW chunk only; rows whose index lies outside the chunk contribute 0.
    local = idx - h * t_hw                                        # (K, 1)
    hw_iota = jax.lax.broadcasted_iota(jnp.int32, (k, t_hw), 1)   # (K, tHW)
    onehot = (hw_iota == local).astype(feat.dtype)                # (K, tHW) 0/1, exact in bf16 too

    # Gather rows via the MXU, contracting over HW: (K,tHW) . (C,tHW)^T -> (K, C).
    acc_ref[...] += jax.lax.dot_general(
        onehot, feat,
        dimension_numbers=(((1,), (1,)), ((), ())),
        preferred_element_type=jnp.float32)

    @pl.when(h == pl.num_programs(1) - 1)
    def _():
        m = mask_ref[0].astype(jnp.float32)    # (K, C)
        tgt = tgt_ref[0].astype(jnp.float32)   # (K, C)
        pred = acc_ref[...]                    # (K, C) f32
        total = jnp.sum(jnp.abs(pred * m - tgt * m))
        out_ref[...] = jnp.reshape(total, (1, 1, 1))


def _pick_hw_tile(hw, c, k, bytes_per_elem):
    """Largest 128-multiple tile of HW whose VMEM footprint (double-buffered feat stream
    + one-hot intermediate) stays comfortably within the scoped-VMEM window."""
    budget = 6 * 1024 * 1024
    for cand in (8192, 4096, 2048, 1024, 512, 256, 128):
        if hw % cand != 0:
            continue
        feat_bytes = 2 * c * cand * bytes_per_elem      # double-buffered feat tile
        onehot_bytes = k * cand * 4                     # one-hot + iota intermediates
        if feat_bytes + onehot_bytes <= budget:
            return cand
    return hw  # not 128-divisible (or tiny): single untiled step over the full extent


def reg_weighted_l1_loss_pallas(output_nchw, mask, ind, target):
    """output_nchw: [B, C, H, W]; mask: broadcastable to [B, K, C]; ind: [B, K] int; target: [B, K, C]."""
    B, C, H, W = output_nchw.shape
    K = ind.shape[1]
    HW = H * W

    # Free reshape (no transpose / extra HBM pass): NCHW -> (B, C, HW).
    # Row `i` of the PyTorch (B, HW, C) view == column `i` of (B, C, HW).
    feat = output_nchw.reshape(B, C, HW)
    ind3 = ind.astype(jnp.int32).reshape(B, K, 1)
    mask_f = mask.astype(jnp.float32)
    mask_sum = jnp.sum(mask_f)                                   # normalizer uses the ORIGINAL mask
    mask3 = jnp.broadcast_to(mask_f, (B, K, C))
    tgt = target

    t_hw = _pick_hw_tile(HW, C, K, feat.dtype.itemsize)
    n_hw = HW // t_hw

    partials = pl.pallas_call(
        _reg_weighted_l1_kernel,
        out_shape=jax.ShapeDtypeStruct((B, 1, 1), jnp.float32),
        grid_spec=pltpu.PrefetchScalarGridSpec(
            num_scalar_prefetch=0,
            grid=(B, n_hw),
            in_specs=[
                pl.BlockSpec((1, C, t_hw), lambda b, h: (b, 0, h)),
                pl.BlockSpec((1, K, 1), lambda b, h: (b, 0, 0)),
                pl.BlockSpec((1, K, C), lambda b, h: (b, 0, 0)),
                pl.BlockSpec((1, K, C), lambda b, h: (b, 0, 0)),
            ],
            out_specs=pl.BlockSpec((1, 1, 1), lambda b, h: (b, 0, 0)),
            scratch_shapes=[pltpu.VMEM((K, C), jnp.float32)],
        ),
        compiler_params=pltpu.CompilerParams(
            # batch partials shard across TCs on v7x; HW is the resident reduction axis
            dimension_semantics=("parallel", "arbitrary"),
            vmem_limit_bytes=32 * 1024 * 1024,
        ),
    )(feat, ind3, mask3, tgt)

    total = jnp.sum(partials)
    return total / (mask_sum + jnp.float32(0.0001))


def reg_weighted_l1_loss_ref(output_nchw, mask, ind, target):
    B, C, H, W = output_nchw.shape
    feat = jnp.transpose(output_nchw, (0, 2, 3, 1)).reshape(B, H * W, C)
    pred = jnp.take_along_axis(feat, ind.astype(jnp.int32)[:, :, None], axis=1)  # (B, K, C)
    m = mask.astype(jnp.float32)
    loss = jnp.sum(jnp.abs(pred * m - target.astype(jnp.float32) * m))
    return loss / (jnp.sum(m) + jnp.float32(0.0001))


if __name__ == "__main__":
    B, C, H, W, K = 2, 4, 16, 16, 8
    key = jax.random.PRNGKey(0)
    k1, k2, k3, k4 = jax.random.split(key, 4)

    output = jax.random.normal(k1, (B, C, H, W), dtype=jnp.float32)     # NCHW
    target = jax.random.normal(k2, (B, K, C), dtype=jnp.float32)
    ind = jax.random.randint(k3, (B, K), 0, H * W, dtype=jnp.int32)
    mask = jax.random.bernoulli(k4, 0.7, (B, K, C)).astype(jnp.float32)  # per-element weights

    loss = jax.block_until_ready(reg_weighted_l1_loss_pallas(output, mask, ind, target))
    ref = jax.block_until_ready(reg_weighted_l1_loss_ref(output, mask, ind, target))

    assert jnp.allclose(loss, ref, rtol=1e-5, atol=1e-5), (loss, ref)
    print("KERNEL_OK")
</pallas_src>

<mosaic_0001>
module attributes {stable_mosaic.version = 11 : i64} {
  func.func @_reg_weighted_l1_kernel(%arg0: i32, %arg1: i32, %arg2: memref<1x4x256xf32, #tpu.memory_space<vmem>>, %arg3: memref<1x8x1xi32, #tpu.memory_space<vmem>>, %arg4: memref<1x8x4xf32, #tpu.memory_space<vmem>>, %arg5: memref<1x8x4xf32, #tpu.memory_space<vmem>>, %arg6: memref<1x1x1xf32, #tpu.memory_space<vmem>>, %arg7: memref<8x4xf32, #tpu.memory_space<vmem>>) attributes {dimension_semantics = [#tpu.dimension_semantics<parallel>, #tpu.dimension_semantics<arbitrary>], iteration_bounds = array<i64: 2, 1>, scalar_prefetch = 0 : i64, scratch_operands = 1 : i64, tpu.core_type = #tpu.core_type<tc>, window_params = [{transform_indices = @transform_0, window_bounds = array<i64: 1, 4, 256>}, {transform_indices = @transform_1, window_bounds = array<i64: 1, 8, 1>}, {transform_indices = @transform_2, window_bounds = array<i64: 1, 8, 4>}, {transform_indices = @transform_3, window_bounds = array<i64: 1, 8, 4>}, {transform_indices = @transform_4, window_bounds = array<i64: 1, 1, 1>}]} {
    %c0_i32 = arith.constant 0 : i32
    %0 = arith.cmpi eq, %arg1, %c0_i32 : i32
    %1 = arith.extui %0 : i1 to i32
    %c0_i32_0 = arith.constant 0 : i32
    %2 = arith.cmpi ne, %1, %c0_i32_0 : i32
    scf.if %2 {
      %cst_12 = arith.constant 0.000000e+00 : f32
      %22 = vector.broadcast %cst_12 : f32 to vector<8x4xf32>
      %c0_13 = arith.constant 0 : index
      %c0_14 = arith.constant 0 : index
      %23 = vector.load %arg7[%c0_13, %c0_14] : memref<8x4xf32, #tpu.memory_space<vmem>>, vector<8x4xf32>
      tpu.vector_store %arg7[%c0_13, %c0_14], %22 {strides = array<i32>} : memref<8x4xf32, #tpu.memory_space<vmem>>, vector<8x4xf32>,
    } else {
    }
    %c0 = arith.constant 0 : index
    %c0_1 = arith.constant 0 : index
    %c0_2 = arith.constant 0 : index
    %3 = vector.load %arg2[%c0, %c0_1, %c0_2] : memref<1x4x256xf32, #tpu.memory_space<vmem>>, vector<1x4x256xf32>
    %4 = vector.shape_cast %3 : vector<1x4x256xf32> to vector<4x256xf32>
    %c0_3 = arith.constant 0 : index
    %c0_4 = arith.constant 0 : index
    %c0_5 = arith.constant 0 : index
    %5 = vector.load %arg3[%c0_3, %c0_4, %c0_5] : memref<1x8x1xi32, #tpu.memory_space<vmem>>, vector<1x8x1xi32>
    %6 = vector.shape_cast %5 : vector<1x8x1xi32> to vector<8x1xi32>
    %c256_i32 = arith.constant 256 : i32
    %7 = arith.muli %arg1, %c256_i32 : i32
    %8 = vector.broadcast %7 : i32 to vector<8x1xi32>
    %9 = arith.subi %6, %8 : vector<8x1xi32>
    %10 = tpu.iota {dimensions = array<i32: 1>} : vector<8x256xi32>
    %11 = vector.broadcast %9 : vector<8x1xi32> to vector<8x256xi32>
    %12 = arith.cmpi eq, %10, %11 : vector<8x256xi32>
    %13 = arith.extui %12 : vector<8x256xi1> to vector<8x256xi32>
    %14 = arith.sitofp %13 : vector<8x256xi32> to vector<8x256xf32>
    %c0_6 = arith.constant 0 : index
    %c0_7 = arith.constant 0 : index
    %15 = vector.load %arg7[%c0_6, %c0_7] : memref<8x4xf32, #tpu.memory_space<vmem>>, vector<8x4xf32>
    %cst = arith.constant dense<0.000000e+00> : vector<8x4xf32>
    %16 = tpu.matmul %14, %4, %cst {dimension_numbers = #tpu.dot_dimension_numbers<[1], [1], [0], [0], [0, 0, 1, 0], [], []>} : vector<8x256xf32>, vector<4x256xf32>, vector<8x4xf32> -> vector<8x4xf32>
    %17 = arith.addf %15, %16 : vector<8x4xf32>
    %c0_8 = arith.constant 0 : index
    %c0_9 = arith.constant 0 : index
    %18 = vector.load %arg7[%c0_8, %c0_9] : memref<8x4xf32, #tpu.memory_space<vmem>>, vector<8x4xf32>
    tpu.vector_store %arg7[%c0_8, %c0_9], %17 {strides = array<i32>} : memref<8x4xf32, #tpu.memory_space<vmem>>, vector<8x4xf32>,
    %c0_i32_10 = arith.constant 0 : i32
    %19 = arith.cmpi eq, %arg1, %c0_i32_10 : i32
    %20 = arith.extui %19 : i1 to i32
    %c0_i32_11 = arith.constant 0 : i32
    %21 = arith.cmpi ne, %20, %c0_i32_11 : i32
    scf.if %21 {
      %c0_12 = arith.constant 0 : index
      %c0_13 = arith.constant 0 : index
      %c0_14 = arith.constant 0 : index
      %22 = vector.load %arg4[%c0_12, %c0_13, %c0_14] : memref<1x8x4xf32, #tpu.memory_space<vmem>>, vector<1x8x4xf32>
      %23 = vector.shape_cast %22 : vector<1x8x4xf32> to vector<8x4xf32>
      %c0_15 = arith.constant 0 : index
      %c0_16 = arith.constant 0 : index
      %c0_17 = arith.constant 0 : index
      %24 = vector.load %arg5[%c0_15, %c0_16, %c0_17] : memref<1x8x4xf32, #tpu.memory_space<vmem>>, vector<1x8x4xf32>
      %25 = vector.shape_cast %24 : vector<1x8x4xf32> to vector<8x4xf32>
      %c0_18 = arith.constant 0 : index
      %c0_19 = arith.constant 0 : index
      %26 = vector.load %arg7[%c0_18, %c0_19] : memref<8x4xf32, #tpu.memory_space<vmem>>, vector<8x4xf32>
      %27 = arith.mulf %26, %23 : vector<8x4xf32>
      %28 = arith.mulf %25, %23 : vector<8x4xf32>
      %29 = arith.subf %27, %28 : vector<8x4xf32>
      %30 = math.absf %29 : vector<8x4xf32>
      %31 = vector.shape_cast %30 : vector<8x4xf32> to vector<1x8x4xf32>
      %cst_20 = arith.constant dense<0.000000e+00> : vector<1xf32>
      %32 = vector.multi_reduction <add>, %31, %cst_20 [1, 2] : vector<1x8x4xf32> to vector<1xf32>
      %33 = vector.shape_cast %32 : vector<1xf32> to vector<1x1x1xf32>
      %34 = vector.extract %33[0, 0, 0] : f32 from vector<1x1x1xf32>
      %35 = vector.broadcast %34 : f32 to vector<1x1x1xf32>
      %c0_21 = arith.constant 0 : index
      %c0_22 = arith.constant 0 : index
      %c0_23 = arith.constant 0 : index
      %36 = vector.load %arg6[%c0_21, %c0_22, %c0_23] : memref<1x1x1xf32, #tpu.memory_space<vmem>>, vector<1x1x1xf32>
      tpu.vector_store %arg6[%c0_21, %c0_22, %c0_23], %35 {strides = array<i32>} : memref<1x1x1xf32, #tpu.memory_space<vmem>>, vector<1x1x1xf32>,
    } else {
    }
    return
  }
  func.func @transform_0(%arg0: i32, %arg1: i32) -> (i32, i32, i32) {
    %c0_i32 = arith.constant 0 : i32
    %c0_i32_0 = arith.constant 0 : i32
    return %arg0, %c0_i32, %arg1 : i32, i32, i32
  }
  func.func @transform_1(%arg0: i32, %arg1: i32) -> (i32, i32, i32) {
    %c0_i32 = arith.constant 0 : i32
    %c0_i32_0 = arith.constant 0 : i32
    %c0_i32_1 = arith.constant 0 : i32
    return %arg0, %c0_i32, %c0_i32_0 : i32, i32, i32
  }
  func.func @transform_2(%arg0: i32, %arg1: i32) -> (i32, i32, i32) {
    %c0_i32 = arith.constant 0 : i32
    %c0_i32_0 = arith.constant 0 : i32
    %c0_i32_1 = arith.constant 0 : i32
    return %arg0, %c0_i32, %c0_i32_0 : i32, i32, i32
  }
  func.func @transform_3(%arg0: i32, %arg1: i32) -> (i32, i32, i32) {
    %c0_i32 = arith.constant 0 : i32
    %c0_i32_0 = arith.constant 0 : i32
    %c0_i32_1 = arith.constant 0 : i32
    return %arg0, %c0_i32, %c0_i32_0 : i32, i32, i32
  }
  func.func @transform_4(%arg0: i32, %arg1: i32) -> (i32, i32, i32) {
    %c0_i32 = arith.constant 0 : i32
    %c0_i32_0 = arith.constant 0 : i32
    %c0_i32_1 = arith.constant 0 : i32
    return %arg0, %c0_i32, %c0_i32_0 : i32, i32, i32
  }
}

</mosaic_0001>

<llo_original>
// kernel: tpu_custom_call.1
$region0: #{tpu_custom_call.1}
  #allocation0 [shape = 'u32[]', space=smem, size = 0x4, offset = 0x4, fixed_abs, tag = 'smem constant byte address 0x4 - core index']
  #allocation1 [shape = 'u32[72,128]{1,0:T(1,128)}', space=vmem, size = 0x9000, scoped, tag = 'internal scratch']
  #allocation2 [shape = 'f32[8,4]{1,0:T(8,128)}', space=vmem, size = 0x1000, scoped, tag = 'scratch operand']
  %s0 = inlined_call_operand.vmem [shape: f32[2,4,256], index: 0, kind: input, shape index: {}]
  %s1 = inlined_call_operand.vmem [shape: s32[2,8,1], index: 1, kind: input, shape index: {}]
  %s2 = inlined_call_operand.vmem [shape: f32[2,8,4], index: 2, kind: input, shape index: {}]
  %s3 = inlined_call_operand.vmem [shape: f32[2,8,4], index: 3, kind: input, shape index: {}]
  %s4 = inlined_call_operand.vmem [shape: f32[2,1,1], index: 4, kind: output, shape index: {}]
  %s5 = sld [smem:[#allocation0]]
  $region57: #{tpu_custom_call.1} parent=0
    _
  %s7 = ssub.s32 1, %s5
  %s8 = scalar_select 0, %s7, %s5
  loop: start=0, step=1, limit=4
  $region2: #{tpu_custom_call.1} parent=0 // loop_pre_header
    _
  $region3: #{tpu_custom_call.1} parent=0 // loop_header
    %s10 = sphi 0, %s14
    %p11 = scmp.ge.s32.totalorder %s10, 4
    %s17 = sphi 0, %s29
    %s18 = sphi 0, %s25
    %s19 = sphi 0, %s17
    %s20 = sphi 0, %s18
    %s21 = sphi 0, %s19
    %s22 = sphi 0, %s20
    %s34 = sphi 0, %s36
    %s37 = sphi 0, %s34
    %s38 = sphi 0, %s37
    %s54 = sphi 0, %s38
    %s60 = sphi 0, %s62
    %s63 = sphi 0, %s60
    %s64 = sphi 0, %s63
    %s80 = sphi 0, %s64
    %s86 = sphi 0, %s88
    %s89 = sphi 0, %s86
    %s90 = sphi 0, %s89
    %s106 = sphi 0, %s90
    %s112 = sphi 0, %s114
    %s115 = sphi 0, %s112
    %s116 = sphi 0, %s115
    %s132 = sphi 0, %s116
    %s138 = sphi 0, %s140
    %s141 = sphi 0, %s138
    %s142 = sphi 0, %s141
    %s158 = sphi 0, %s142
  $region4: #{tpu_custom_call.1} parent=0 // loop_header_branch
    %13 = sbr.rel (%p11) target = $region8
  $region5: #{tpu_custom_call.1} parent=0 // loop_body
    %s15 = ssub.s32 %s10, 1
    %s16 = ssub.s32 %s10, 2
    %s23 = sadd.s32 1, %s18
    %p24 = scmp.ge.s32.totalorder %s23, 1
    %s25 = scalar_select %p24, 0, %s23
    %s26 = sadd.s32 1, %s17
    %s27 = scalar_select %p24, %s26, %s17
    %p28 = scmp.ge.s32.totalorder %s27, 2
    %s29 = scalar_select %p28, 0, %s27
    %s30 = ssub.s32 %s17, %s29
    %s31 = ssub.s32 %s18, %s25
    %s32 = sor.u32 %s30, %s31
    %p33 = scmp.eq.s32.totalorder %s32, 0
    %s35 = sadd.s32 %s34, 1
    %s36 = scalar_select %p33, %s34, %s35
    %p39 = pneg %p33
    %p40 = scmp.eq.s32.totalorder %s10, 1
    %p41 = por %p39, %p40
    %p42 = scmp.ne.s32.totalorder %s34, %s37
    %p43 = scmp.eq.s32.totalorder %s10, 0
    %p44 = por %p42, %p43
    %p45 = scmp.ne.s32.totalorder %s34, %s37
    %p46 = scmp.eq.s32.totalorder %s15, 1
    %p47 = por %p45, %p46
    %p48 = scmp.ne.s32.totalorder %s37, %s38
    %p49 = scmp.eq.s32.totalorder %s15, 0
    %p50 = por %p48, %p49
    %p51 = scmp.ne.s32.totalorder %s37, %s38
    %p52 = scmp.eq.s32.totalorder %s16, 1
    %p53 = por %p51, %p52
    %p55 = scmp.ne.s32.totalorder %s38, %s54
    %p56 = scmp.eq.s32.totalorder %s16, 0
    %p57 = por %p55, %p56
    %s58 = ssub.s32 %s17, %s29
    %p59 = scmp.eq.s32.totalorder %s58, 0
    %s61 = sadd.s32 %s60, 1
    %s62 = scalar_select %p59, %s60, %s61
    %p65 = pneg %p59
    %p66 = scmp.eq.s32.totalorder %s10, 1
    %p67 = por %p65, %p66
    %p68 = scmp.ne.s32.totalorder %s60, %s63
    %p69 = scmp.eq.s32.totalorder %s10, 0
    %p70 = por %p68, %p69
    %p71 = scmp.ne.s32.totalorder %s60, %s63
    %p72 = scmp.eq.s32.totalorder %s15, 1
    %p73 = por %p71, %p72
    %p74 = scmp.ne.s32.totalorder %s63, %s64
    %p75 = scmp.eq.s32.totalorder %s15, 0
    %p76 = por %p74, %p75
    %p77 = scmp.ne.s32.totalorder %s63, %s64
    %p78 = scmp.eq.s32.totalorder %s16, 1
    %p79 = por %p77, %p78
    %p81 = scmp.ne.s32.totalorder %s64, %s80
    %p82 = scmp.eq.s32.totalorder %s16, 0
    %p83 = por %p81, %p82
    %s84 = ssub.s32 %s17, %s29
    %p85 = scmp.eq.s32.totalorder %s84, 0
    %s87 = sadd.s32 %s86, 1
    %s88 = scalar_select %p85, %s86, %s87
    %p91 = pneg %p85
    %p92 = scmp.eq.s32.totalorder %s10, 1
    %p93 = por %p91, %p92
    %p94 = scmp.ne.s32.totalorder %s86, %s89
    %p95 = scmp.eq.s32.totalorder %s10, 0
    %p96 = por %p94, %p95
    %p97 = scmp.ne.s32.totalorder %s86, %s89
    %p98 = scmp.eq.s32.totalorder %s15, 1
    %p99 = por %p97, %p98
    %p100 = scmp.ne.s32.totalorder %s89, %s90
    %p101 = scmp.eq.s32.totalorder %s15, 0
    %p102 = por %p100, %p101
    %p103 = scmp.ne.s32.totalorder %s89, %s90
    %p104 = scmp.eq.s32.totalorder %s16, 1
    %p105 = por %p103, %p104
    %p107 = scmp.ne.s32.totalorder %s90, %s106
    %p108 = scmp.eq.s32.totalorder %s16, 0
    %p109 = por %p107, %p108
    %s110 = ssub.s32 %s17, %s29
    %p111 = scmp.eq.s32.totalorder %s110, 0
    %s113 = sadd.s32 %s112, 1
    %s114 = scalar_select %p111, %s112, %s113
    %p117 = pneg %p111
    %p118 = scmp.eq.s32.totalorder %s10, 1
    %p119 = por %p117, %p118
    %p120 = scmp.ne.s32.totalorder %s112, %s115
    %p121 = scmp.eq.s32.totalorder %s10, 0
    %p122 = por %p120, %p121
    %p123 = scmp.ne.s32.totalorder %s112, %s115
    %p124 = scmp.eq.s32.totalorder %s15, 1
    %p125 = por %p123, %p124
    %p126 = scmp.ne.s32.totalorder %s115, %s116
    %p127 = scmp.eq.s32.totalorder %s15, 0
    %p128 = por %p126, %p127
    %p129 = scmp.ne.s32.totalorder %s115, %s116
    %p130 = scmp.eq.s32.totalorder %s16, 1
    %p131 = por %p129, %p130
    %p133 = scmp.ne.s32.totalorder %s116, %s132
    %p134 = scmp.eq.s32.totalorder %s16, 0
    %p135 = por %p133, %p134
    %s136 = ssub.s32 %s17, %s29
    %p137 = scmp.eq.s32.totalorder %s136, 0
    %s139 = sadd.s32 %s138, 1
    %s140 = scalar_select %p137, %s138, %s139
    %p143 = pneg %p137
    %p144 = scmp.eq.s32.totalorder %s10, 1
    %p145 = por %p143, %p144
    %p146 = scmp.ne.s32.totalorder %s138, %s141
    %p147 = scmp.eq.s32.totalorder %s10, 0
    %p148 = por %p146, %p147
    %p149 = scmp.ne.s32.totalorder %s138, %s141
    %p150 = scmp.eq.s32.totalorder %s15, 1
    %p151 = por %p149, %p150
    %p152 = scmp.ne.s32.totalorder %s141, %s142
    %p153 = scmp.eq.s32.totalorder %s15, 0
    %p154 = por %p152, %p153
    %p155 = scmp.ne.s32.totalorder %s141, %s142
    %p156 = scmp.eq.s32.totalorder %s16, 1
    %p157 = por %p155, %p156
    %p159 = scmp.ne.s32.totalorder %s142, %s158
    %p160 = scmp.eq.s32.totalorder %s16, 0
    %p161 = por %p159, %p160
    %p162 = scmp.le.s32.totalorder 1, %s10
    %p163 = scmp.lt.s32.totalorder %s10, 3
    %p164 = pnand %p162, %p163
    %p165 = pneg %p164
    // Predicated region
    $region9: #{tpu_custom_call.1} parent=5 // pred_check
      _
    $region10: #{tpu_custom_call.1} parent=5 // pred_check_branch
      %167 = sbr.rel (%p164) target = $region12
    $region11: #{tpu_custom_call.1} parent=5 // pred_region
      %s168 = ssub.s32 %s10, 1
    $region12: #{tpu_custom_call.1} parent=5 // pred_fallthru
      _
    %p169 = scmp.lt.s32.totalorder %s10, 2
    // Predicated region
    $region13: #{tpu_custom_call.1} parent=5 // pred_check
      %p170 = pneg %p169
    $region14: #{tpu_custom_call.1} parent=5 // pred_check_branch
      %172 = sbr.rel (%p170) target = $region16
    $region15: #{tpu_custom_call.1} parent=5 // pred_region
      // Predicated region
      $region17: #{tpu_custom_call.1} parent=15 // pred_check
        %p173 = pneg %p44
      $region18: #{tpu_custom_call.1} parent=15 // pred_check_branch
        %175 = sbr.rel (%p173) target = $region20
      $region19: #{tpu_custom_call.1} parent=15 // pred_region
        %s176 = smul.u32 2, %s18
        %p177 = scmp.lt.s32.totalorder %s17, 1
        %s178 = scalar_select %p177, %s17, 1
        %p179 = scmp.lt.s32.totalorder %s176, 1
        %s180 = scalar_select %p179, %s176, 1
        %s181 = smul.addr %s178, 2
        %s182 = sadd.s32 %s180, %s181
        %s183 = smul.addr %s182, 4
        %s184 = scalar_lea.vmem %s0, %s183
        %s185 = smul.u32 2, %s18
      $region20: #{tpu_custom_call.1} parent=15 // pred_fallthru
        _
      // Predicated region
      $region21: #{tpu_custom_call.1} parent=15 // pred_check
        %p186 = pneg %p70
      $region22: #{tpu_custom_call.1} parent=15 // pred_check_branch
        %188 = sbr.rel (%p186) target = $region24
      $region23: #{tpu_custom_call.1} parent=15 // pred_region
        %p189 = scmp.lt.s32.totalorder %s17, 1
        %s190 = scalar_select %p189, %s17, 1
        %s191 = smul.addr %s190, 8
        %s192 = scalar_lea.vmem %s1, %s191
      $region24: #{tpu_custom_call.1} parent=15 // pred_fallthru
        _
      // Predicated region
      $region25: #{tpu_custom_call.1} parent=15 // pred_check
        %p193 = pneg %p96
      $region26: #{tpu_custom_call.1} parent=15 // pred_check_branch
        %195 = sbr.rel (%p193) target = $region28
      $region27: #{tpu_custom_call.1} parent=15 // pred_region
        %p196 = scmp.lt.s32.totalorder %s17, 1
        %s197 = scalar_select %p196, %s17, 1
        %s198 = smul.addr %s197, 8
        %s199 = scalar_lea.vmem %s2, %s198
      $region28: #{tpu_custom_call.1} parent=15 // pred_fallthru
        _
      // Predicated region
      $region29: #{tpu_custom_call.1} parent=15 // pred_check
        %p200 = pneg %p122
      $region30: #{tpu_custom_call.1} parent=15 // pred_check_branch
        %202 = sbr.rel (%p200) target = $region32
      $region31: #{tpu_custom_call.1} parent=15 // pred_region
        %p203 = scmp.lt.s32.totalorder %s17, 1
        %s204 = scalar_select %p203, %s17, 1
        %s205 = smul.addr %s204, 8
        %s206 = scalar_lea.vmem %s3, %s205
      $region32: #{tpu_custom_call.1} parent=15 // pred_fallthru
        _
    $region16: #{tpu_custom_call.1} parent=5 // pred_fallthru
      _
    %p207 = scmp.le.s32.totalorder 1, %s10
    %p208 = scmp.lt.s32.totalorder %s10, 3
    %p209 = pnand %p207, %p208
    %p210 = pneg %p209
    // Predicated region
    $region33: #{tpu_custom_call.1} parent=5 // pred_check
      _
    $region34: #{tpu_custom_call.1} parent=5 // pred_check_branch
      %212 = sbr.rel (%p209) target = $region36
    $region35: #{tpu_custom_call.1} parent=5 // pred_region
      %s213 = ssub.s32 %s10, 1
      %s214 = smul.u32 2, %s20
      %p215 = scmp.lt.s32.totalorder %s19, 1
      %s216 = scalar_select %p215, %s19, 1
      %p217 = scmp.lt.s32.totalorder %s214, 1
      %s218 = scalar_select %p217, %s214, 1
      %s219 = smul.addr %s216, 2
      %s220 = sadd.s32 %s218, %s219
      %s221 = smul.addr %s220, 4
      %s222 = scalar_lea.vmem %s0, %s221
      %p223 = pneg %p50
      %p224 = pneg %p47
      %p225 = scmp.lt.s32.totalorder %s19, 1
      %s226 = scalar_select %p225, %s19, 1
      %s227 = smul.addr %s226, 8
      %s228 = scalar_lea.vmem %s1, %s227
      %p229 = pneg %p76
      %p230 = pneg %p73
      %p231 = scmp.lt.s32.totalorder %s19, 1
      %s232 = scalar_select %p231, %s19, 1
      %s233 = smul.addr %s232, 8
      %s234 = scalar_lea.vmem %s2, %s233
      %p235 = pneg %p102
      %p236 = pneg %p99
      %p237 = scmp.lt.s32.totalorder %s19, 1
      %s238 = scalar_select %p237, %s19, 1
      %s239 = smul.addr %s238, 8
      %s240 = scalar_lea.vmem %s3, %s239
      %p241 = pneg %p128
      %p242 = pneg %p125
      %p243 = pneg %p154
      %p244 = pneg %p151
      %p245 = scmp.lt.s32.totalorder %s19, 1
      %s246 = scalar_select %p245, %s19, 1
      %s247 = scalar_lea.vmem %s4, %s246
      %s248 = smul.u32 2, %s20
      %p249 = scmp.lt.s32.totalorder %s19, 1
      %s250 = scalar_select %p249, %s19, 1
      %p251 = scmp.lt.s32.totalorder %s248, 1
      %s252 = scalar_select %p251, %s248, 1
      %s253 = smul.addr %s250, 2
      %s254 = sadd.s32 %s252, %s253
      %s255 = smul.addr %s254, 4
      %s256 = scalar_lea.vmem %s0, %s255
      %s257 = smul.u32 2, %s20
      %p258 = scmp.lt.s32.totalorder %s19, 1
      %s259 = scalar_select %p258, %s19, 1
      %s260 = smul.addr %s259, 8
      %s261 = scalar_lea.vmem %s1, %s260
      %p262 = scmp.lt.s32.totalorder %s19, 1
      %s263 = scalar_select %p262, %s19, 1
      %s264 = smul.addr %s263, 8
      %s265 = scalar_lea.vmem %s2, %s264
      %p266 = scmp.lt.s32.totalorder %s19, 1
      %s267 = scalar_select %p266, %s19, 1
      %s268 = smul.addr %s267, 8
      %s269 = scalar_lea.vmem %s3, %s268
      %p270 = scmp.lt.s32.totalorder %s19, 1
      %s271 = scalar_select %p270, %s19, 1
      %s272 = scalar_lea.vmem %s4, %s271
      %p273 = scmp.eq.s32.totalorder %s20, 0
      // Predicated region
      $region37: #{tpu_custom_call.1} parent=35 // pred_check
        %p274 = pneg %p273
      $region38: #{tpu_custom_call.1} parent=35 // pred_check_branch
        %276 = sbr.rel (%p274) target = $region40
      $region39: #{tpu_custom_call.1} parent=35 // pred_region
        %vm277 = vcmask 31744
        %278 = vst.msk [vmem:[#allocation2] sm:$0xff] %vm277, 0.0
      $region40: #{tpu_custom_call.1} parent=35 // pred_fallthru
        _
      %v279 = vld [vmem:[%s256] sm:$0xff]
      %v280 = vld [vmem:[%s261] sm:$0xff]
      %s281 = smul.u32 %s20, 256
      %v282 = vstv %s281
      %v283 = vsub.s32 %v280, %v282
      %v284 = vlaneseq
      %v285 = vand.u32 %v284, 127
      %v286 = vadd.s32 %v285, 128
      %287 = vset.pattern.permute.xlu0 0
      %288 = vperm.xlu0 %287, %v283
      %v289 = vpop.permute.xlu0 %288
      %vm290 = vcmp.eq.s32.totalorder %v285, %v289
      %vm291 = vcmp.eq.s32.totalorder %v286, %v289
      %v292 = vsel %vm290, 1, 0
      %v293 = vsel %vm291, 1, 0
      %v294 = vcvt.s32.f32 %v292
      %v295 = vcvt.s32.f32 %v293
      %v296 = vld [vmem:[#allocation2] sm:$0xff]
      %298 = vst [vmem:[#allocation1] ss:$2 sm:$0xff] %v279
      %v299 = vld.sshfl [vmem:[#allocation1] sm:$0xff pattern:$0x75316420]
      %v300 = vld.sshfl [vmem:[#allocation1 + $0x8] sm:$0xff pattern:$0x75316420]
      %303 = vmatpush.xpose.msra.mxu0 0.0
      %304 = vmatpush.xpose.msra.mxu0 0.0
      %305 = vmatpush.xpose.msra.mxu0 0.0
      %306 = vmatpush.xpose.msra.mxu0 0.0
      %307 = vmatpush.xpose.msra.mxu0 0.0
      %308 = vmatpush.xpose.msra.mxu0 0.0
      %309 = vmatpush.xpose.msra.mxu0 0.0
      %310 = vmatpush.xpose.msra.mxu0 0.0
      %311 = vmatpush.xpose.msra.mxu0 0.0
      %312 = vmatpush.xpose.msra.mxu0 0.0
      %313 = vmatpush.xpose.msra.mxu0 0.0
      %314 = vmatpush.xpose.msra.mxu0 0.0
      %315 = vmatpush.xpose.msra.mxu0 0.0
      %316 = vmatpush.xpose.msra.mxu0 0.0
      %317 = vmatpush.xpose.msra.mxu0 0.0
      %318 = vmatpush.xpose.msra.mxu0 %v299
      %319 = vmatmul.f32.gmra.mxu0 %v294
      %v320 = vpop.f32.mrf.mxu0
      %v321 = vadd.f32 0.0, %v320
      %322 = vdwg.mxu0
      %323 = vmatpush.xpose.msra.mxu0 0.0
      %324 = vmatpush.xpose.msra.mxu0 0.0
      %325 = vmatpush.xpose.msra.mxu0 0.0
      %326 = vmatpush.xpose.msra.mxu0 0.0
      %327 = vmatpush.xpose.msra.mxu0 0.0
      %328 = vmatpush.xpose.msra.mxu0 0.0
      %329 = vmatpush.xpose.msra.mxu0 0.0
      %330 = vmatpush.xpose.msra.mxu0 0.0
      %331 = vmatpush.xpose.msra.mxu0 0.0
      %332 = vmatpush.xpose.msra.mxu0 0.0
      %333 = vmatpush.xpose.msra.mxu0 0.0
      %334 = vmatpush.xpose.msra.mxu0 0.0
      %335 = vmatpush.xpose.msra.mxu0 0.0
      %336 = vmatpush.xpose.msra.mxu0 0.0
      %337 = vmatpush.xpose.msra.mxu0 0.0
      %338 = vmatpush.xpose.msra.mxu0 %v300
      %339 = vmatmul.f32.gmra.mxu0 %v295
      %v340 = vpop.f32.mrf.mxu0
      %v341 = vadd.f32 %v321, %v340
      %342 = vdwg.mxu0
      %v343 = vadd.f32 %v296, %v341
      %vm344 = vcmask 31744
      %345 = vst.msk [vmem:[#allocation2] sm:$0xff] %vm344, %v343
      // Predicated region
      $region41: #{tpu_custom_call.1} parent=35 // pred_check
        %p346 = pneg %p273
      $region42: #{tpu_custom_call.1} parent=35 // pred_check_branch
        %348 = sbr.rel (%p346) target = $region44
      $region43: #{tpu_custom_call.1} parent=35 // pred_region
        %v349 = vld [vmem:[%s265] sm:$0xff]
        %v350 = vld [vmem:[%s269] sm:$0xff]
        %v351 = vld [vmem:[#allocation2] sm:$0xff]
        %v352 = vmul.f32 %v351, %v349
        %v353 = vmul.f32 %v350, %v349
        %v354 = vsub.f32 %v352, %v353
        %v355 = vand.u32 2147483647, %v354
        %v356 = vsel %vm344, %v355, 0.0
        %357 = vadd.xlane.f32.xlu0 %v356
        %v358 = vpop.xlane.xlu0 %357
        %v359 = vrot.slane %v358, 4
        %v360 = vadd.f32 %v358, %v359
        %v361 = vrot.slane %v360, 2
        %v362 = vadd.f32 %v360, %v361
        %v363 = vrot.slane %v362, 1
        %v364 = vadd.f32 %v362, %v363
        %s365 = vtos %v364
        %v366 = vstv %s365
        %vm367 = vcmask 0
        %368 = vst.msk [vmem:[%s272] sm:$0x1] %vm367, %v366
      $region44: #{tpu_custom_call.1} parent=35 // pred_fallthru
        _
      %p369 = scmp.lt.s32.totalorder %s19, 1
      %s370 = scalar_select %p369, %s19, 1
      %s371 = scalar_lea.vmem %s4, %s370
      // Predicated region
      $region45: #{tpu_custom_call.1} parent=35 // pred_check
        %p372 = pneg %p151
      $region46: #{tpu_custom_call.1} parent=35 // pred_check_branch
        %374 = sbr.rel (%p372) target = $region48
      $region47: #{tpu_custom_call.1} parent=35 // pred_region
        _
      $region48: #{tpu_custom_call.1} parent=35 // pred_fallthru
        _
    $region36: #{tpu_custom_call.1} parent=5 // pred_fallthru
      _
    %p375 = scmp.le.s32.totalorder 2, %s10
    // Predicated region
    $region49: #{tpu_custom_call.1} parent=5 // pred_check
      %p376 = pneg %p375
    $region50: #{tpu_custom_call.1} parent=5 // pred_check_branch
      %378 = sbr.rel (%p376) target = $region52
    $region51: #{tpu_custom_call.1} parent=5 // pred_region
      %s379 = ssub.s32 %s10, 2
      // Predicated region
      $region53: #{tpu_custom_call.1} parent=51 // pred_check
        %p380 = pneg %p157
      $region54: #{tpu_custom_call.1} parent=51 // pred_check_branch
        %382 = sbr.rel (%p380) target = $region56
      $region55: #{tpu_custom_call.1} parent=51 // pred_region
        %p383 = scmp.lt.s32.totalorder %s21, 1
        %s384 = scalar_select %p383, %s21, 1
        %s385 = scalar_lea.vmem %s4, %s384
      $region56: #{tpu_custom_call.1} parent=51 // pred_fallthru
        _
    $region52: #{tpu_custom_call.1} parent=5 // pred_fallthru
      _
  $region6: #{tpu_custom_call.1} parent=0 // loop_footer
    %s14 = sadd.s32 1, %s10
  $region7: #{tpu_custom_call.1} parent=0 // loop_footer_branch
    %9 = sbr.rel target = $region3
  $region8: #{tpu_custom_call.1} parent=0 // loop_exit
    _

</llo_original>
